<compile_context>
chip_gen: v5e
topology: v5e:2x2
jax: 0.10.0
libtpu: 0.0.40
codegen_flags: <defaults>
</compile_context>

<pallas_src>
import functools

import jax
import jax.numpy as jnp
from jax.experimental import pallas as pl
from jax.experimental.pallas import tpu as pltpu


def _ce_partial_kernel(n_rows, logits_ref, target_ref, psum_ref):
    # logits_ref: (TM, C) float, target_ref: (TM, 1) int32,
    # psum_ref:   (8, 128) f32 -- per-tile partial sum at [0, 0].
    i = pl.program_id(0)
    tm = logits_ref.shape[0]

    logits = logits_ref[...].astype(jnp.float32)                 # (TM, C)
    tgt = target_ref[...]                                         # (TM, 1)

    # numerically stable log-sum-exp per row
    row_max = jnp.max(logits, axis=-1, keepdims=True)             # (TM, 1)
    shifted = logits - row_max                                     # (TM, C)
    sumexp = jnp.sum(jnp.exp(shifted), axis=-1, keepdims=True)     # (TM, 1)

    # shifted logit at the target class via a single masked reduce
    col_ids = jax.lax.broadcasted_iota(jnp.int32, shifted.shape, 1)
    tgt_shifted = jnp.sum(
        jnp.where(col_ids == tgt, shifted, 0.0), axis=-1, keepdims=True)

    # per-row NLL; row_max cancels: lse - logit[tgt] = log(sumexp) - shifted[tgt]
    losses = jnp.log(sumexp) - tgt_shifted                         # (TM, 1)

    # mask rows past N (Pallas pads the last tile; padded rows read garbage)
    row_ids = i * tm + jax.lax.broadcasted_iota(jnp.int32, (tm, 1), 0)
    tile_sum = jnp.sum(jnp.where(row_ids < n_rows, losses, 0.0))

    # lane-dense (8, 128) partial block: tile_sum at [0, 0], zeros elsewhere
    r8 = jax.lax.broadcasted_iota(jnp.int32, (8, 128), 0)
    c128 = jax.lax.broadcasted_iota(jnp.int32, (8, 128), 1)
    psum_ref[...] = jnp.where((r8 == 0) & (c128 == 0), tile_sum, 0.0)


def _choose_tile_rows(n, c, dtype):
    """Largest legal batch tile (<=512 rows) fitting a ~24 MiB double-buffer."""
    itemsize = jnp.dtype(dtype).itemsize
    row_mult = 16 if itemsize < 4 else 8      # bf16 packs 16 sublanes / vreg
    budget = 24 * 1024 * 1024                 # bytes for 2x logits tile buffers
    tm = min(n, 512)
    if tm != n:
        tm = max(row_mult, (tm // row_mult) * row_mult)
    while tm > row_mult and 2 * tm * c * itemsize > budget:
        tm = max(row_mult, ((tm // 2) // row_mult) * row_mult)
    return tm


def cross_entropy_cost(logits: jax.Array, target: jax.Array) -> jax.Array:
    """Mean cross-entropy over the batch, == F.cross_entropy(logits, target)."""
    n, c = logits.shape
    target2d = target.astype(jnp.int32).reshape(n, 1)

    tm = _choose_tile_rows(n, c, logits.dtype)
    num_tiles = pl.cdiv(n, tm)

    partials = pl.pallas_call(
        functools.partial(_ce_partial_kernel, n),
        out_shape=jax.ShapeDtypeStruct((num_tiles * 8, 128), jnp.float32),
        grid_spec=pltpu.PrefetchScalarGridSpec(
            num_scalar_prefetch=0,
            grid=(num_tiles,),
            in_specs=[
                pl.BlockSpec((tm, c), lambda i: (i, 0)),
                pl.BlockSpec((tm, 1), lambda i: (i, 0)),
            ],
            out_specs=pl.BlockSpec((8, 128), lambda i: (i, 0)),
        ),
        compiler_params=pltpu.CompilerParams(
            dimension_semantics=("parallel",),     # megacore-shardable on v7x
            vmem_limit_bytes=32 * 1024 * 1024,
        ),
    )(logits, target2d)

    # Tiny combine: each tile's sum sits at [8*i, 0], the rest is zeros.
    return jnp.sum(partials) / jnp.float32(n)


if __name__ == "__main__":
    key = jax.random.PRNGKey(0)
    k_logits, k_target = jax.random.split(key)

    batch, num_classes = 8, 32
    logits = jax.random.normal(k_logits, (batch, num_classes), dtype=jnp.float32)
    target = jax.random.randint(k_target, (batch,), 0, num_classes, dtype=jnp.int32)

    loss = cross_entropy_cost(logits, target)
    jax.block_until_ready(loss)

    # reference check in plain JAX (log_softmax + gather + mean)
    log_probs = jax.nn.log_softmax(logits, axis=-1)
    ref = -jnp.mean(log_probs[jnp.arange(batch), target])
    assert jnp.allclose(loss, ref, atol=1e-5, rtol=1e-5), (loss, ref)

    print("KERNEL_OK")
</pallas_src>

<mosaic_0001>
module attributes {stable_mosaic.version = 11 : i64} {
  func.func @_ce_partial_kernel(%arg0: i32, %arg1: memref<8x32xf32, #tpu.memory_space<vmem>>, %arg2: memref<8x1xi32, #tpu.memory_space<vmem>>, %arg3: memref<8x128xf32, #tpu.memory_space<vmem>>) attributes {dimension_semantics = [#tpu.dimension_semantics<parallel>], iteration_bounds = array<i64: 1>, scalar_prefetch = 0 : i64, scratch_operands = 0 : i64, tpu.core_type = #tpu.core_type<tc>, window_params = [{transform_indices = @transform_0, window_bounds = array<i64: 8, 32>}, {transform_indices = @transform_1, window_bounds = array<i64: 8, 1>}, {transform_indices = @transform_2, window_bounds = array<i64: 8, 128>}]} {
    %c0 = arith.constant 0 : index
    %c0_0 = arith.constant 0 : index
    %0 = vector.load %arg1[%c0, %c0_0] : memref<8x32xf32, #tpu.memory_space<vmem>>, vector<8x32xf32>
    %c0_1 = arith.constant 0 : index
    %c0_2 = arith.constant 0 : index
    %1 = vector.load %arg2[%c0_1, %c0_2] : memref<8x1xi32, #tpu.memory_space<vmem>>, vector<8x1xi32>
    %cst = arith.constant dense<0xFF800000> : vector<8xf32>
    %2 = vector.multi_reduction <maximumf>, %0, %cst [1] : vector<8x32xf32> to vector<8xf32>
    %3 = vector.shape_cast %2 : vector<8xf32> to vector<8x1xf32>
    %4 = vector.broadcast %3 : vector<8x1xf32> to vector<8x32xf32>
    %5 = arith.subf %0, %4 : vector<8x32xf32>
    %6 = math.exp %5 : vector<8x32xf32>
    %cst_3 = arith.constant dense<0.000000e+00> : vector<8xf32>
    %7 = vector.multi_reduction <add>, %6, %cst_3 [1] : vector<8x32xf32> to vector<8xf32>
    %8 = vector.shape_cast %7 : vector<8xf32> to vector<8x1xf32>
    %9 = tpu.iota {dimensions = array<i32: 1>} : vector<8x32xi32>
    %10 = vector.broadcast %1 : vector<8x1xi32> to vector<8x32xi32>
    %11 = arith.cmpi eq, %9, %10 : vector<8x32xi32>
    %cst_4 = arith.constant 0.000000e+00 : f32
    %12 = vector.broadcast %cst_4 : f32 to vector<8x32xf32>
    %13 = arith.select %11, %5, %12 : vector<8x32xi1>, vector<8x32xf32>
    %cst_5 = arith.constant dense<0.000000e+00> : vector<8xf32>
    %14 = vector.multi_reduction <add>, %13, %cst_5 [1] : vector<8x32xf32> to vector<8xf32>
    %15 = vector.shape_cast %14 : vector<8xf32> to vector<8x1xf32>
    %16 = math.log %8 : vector<8x1xf32>
    %17 = arith.subf %16, %15 : vector<8x1xf32>
    %c8_i32 = arith.constant 8 : i32
    %18 = arith.muli %arg0, %c8_i32 : i32
    %19 = tpu.iota {dimensions = array<i32: 0>} : vector<8x1xi32>
    %20 = vector.broadcast %18 : i32 to vector<8x1xi32>
    %21 = arith.addi %20, %19 : vector<8x1xi32>
    %c8_i32_6 = arith.constant 8 : i32
    %22 = vector.broadcast %c8_i32_6 : i32 to vector<8x1xi32>
    %23 = arith.cmpi slt, %21, %22 : vector<8x1xi32>
    %cst_7 = arith.constant 0.000000e+00 : f32
    %24 = vector.broadcast %cst_7 : f32 to vector<8x1xf32>
    %25 = arith.select %23, %17, %24 : vector<8x1xi1>, vector<8x1xf32>
    %26 = vector.shape_cast %25 : vector<8x1xf32> to vector<1x8x1xf32>
    %cst_8 = arith.constant dense<0.000000e+00> : vector<1xf32>
    %27 = vector.multi_reduction <add>, %26, %cst_8 [1, 2] : vector<1x8x1xf32> to vector<1xf32>
    %28 = vector.shape_cast %27 : vector<1xf32> to vector<1x1x1xf32>
    %29 = vector.extract %28[0, 0, 0] : f32 from vector<1x1x1xf32>
    %30 = tpu.iota {dimensions = array<i32: 0>} : vector<8x128xi32>
    %31 = tpu.iota {dimensions = array<i32: 1>} : vector<8x128xi32>
    %c0_i32 = arith.constant 0 : i32
    %32 = vector.broadcast %c0_i32 : i32 to vector<8x128xi32>
    %33 = arith.cmpi eq, %30, %32 : vector<8x128xi32>
    %c0_i32_9 = arith.constant 0 : i32
    %34 = vector.broadcast %c0_i32_9 : i32 to vector<8x128xi32>
    %35 = arith.cmpi eq, %31, %34 : vector<8x128xi32>
    %36 = arith.andi %33, %35 : vector<8x128xi1>
    %cst_10 = arith.constant 0.000000e+00 : f32
    %37 = vector.broadcast %29 : f32 to vector<8x128xf32>
    %38 = vector.broadcast %cst_10 : f32 to vector<8x128xf32>
    %39 = arith.select %36, %37, %38 : vector<8x128xi1>, vector<8x128xf32>
    %c0_11 = arith.constant 0 : index
    %c0_12 = arith.constant 0 : index
    %40 = vector.load %arg3[%c0_11, %c0_12] : memref<8x128xf32, #tpu.memory_space<vmem>>, vector<8x128xf32>
    tpu.vector_store %arg3[%c0_11, %c0_12], %39 {strides = array<i32>} : memref<8x128xf32, #tpu.memory_space<vmem>>, vector<8x128xf32>,
    return
  }
  func.func @transform_0(%arg0: i32) -> (i32, i32) {
    %c0_i32 = arith.constant 0 : i32
    %c0_i32_0 = arith.constant 0 : i32
    return %arg0, %c0_i32 : i32, i32
  }
  func.func @transform_1(%arg0: i32) -> (i32, i32) {
    %c0_i32 = arith.constant 0 : i32
    %c0_i32_0 = arith.constant 0 : i32
    return %arg0, %c0_i32 : i32, i32
  }
  func.func @transform_2(%arg0: i32) -> (i32, i32) {
    %c0_i32 = arith.constant 0 : i32
    %c0_i32_0 = arith.constant 0 : i32
    return %arg0, %c0_i32 : i32, i32
  }
}

</mosaic_0001>

<llo_original>
// kernel: tpu_custom_call.1
$region0: #{tpu_custom_call.1}
  #allocation0 [shape = 'u32[]', space=smem, size = 0x4, offset = 0x4, fixed_abs, tag = 'smem constant byte address 0x4 - core index']
  #allocation1 [shape = 'u32[72,128]{1,0:T(1,128)}', space=vmem, size = 0x9000, scoped, tag = 'internal scratch']
  %s0 = inlined_call_operand.vmem [shape: f32[8,32], index: 0, kind: input, shape index: {}]
  %s1 = inlined_call_operand.vmem [shape: s32[8,1], index: 1, kind: input, shape index: {}]
  %s2 = inlined_call_operand.hbm [shape: f32[8,128], index: 2, kind: output, shape index: {}]
  %s3 = sld [smem:[#allocation0]]
  $region18: #{tpu_custom_call.1} parent=0
    _
  %s5 = ssub.s32 1, %s3
  %s6 = scalar_select 0, %s5, %s3
  $region1: #{tpu_custom_call.1} parent=0
    #allocation2 [shape = 'u8[4096]{0}', space=vmem, size = 0x1000, scoped, tag = 'output window, operand 0, single buffered']
    #allocation3 [shape = 's32[1]{0}', space=sflag, size = 0x4, scoped, tag = 'scoped memory for tpu_custom_call.1']
    %7 = vsyncpa [#allocation3], 0
    // Predicated region
    $region2: #{tpu_custom_call.1} parent=1 // pred_check
      _
    $region3: #{tpu_custom_call.1} parent=1 // pred_check_branch
      %9 = sbr.rel (0) target = $region5
    $region4: #{tpu_custom_call.1} parent=1 // pred_region
      _
    $region5: #{tpu_custom_call.1} parent=1 // pred_fallthru
      _
    // Predicated region
    $region6: #{tpu_custom_call.1} parent=1 // pred_check
      _
    $region7: #{tpu_custom_call.1} parent=1 // pred_check_branch
      %11 = sbr.rel (0) target = $region9
    $region8: #{tpu_custom_call.1} parent=1 // pred_region
      _
    $region9: #{tpu_custom_call.1} parent=1 // pred_fallthru
      _
    %v12 = vld [vmem:[%s0] sm:$0xff]
    %v13 = vld [vmem:[%s1] sm:$0xff]
    %vm14 = vcmask 261120
    %v15 = vsel %vm14, %v12, -inf
    %16 = vmax.xlane.f32.xlu0 %v15
    %v17 = vpop.xlane.xlu0 %16
    %v18 = vsub.f32 %v12, %v17
    %v19 = vmul.f32 %v18, 1.442695
    %v20 = vpow.pop %v19
    %v21 = vsel %vm14, %v20, 0.0
    %22 = vadd.xlane.f32.xlu0 %v21
    %v23 = vpop.xlane.xlu0 %22
    %v24 = vlaneseq
    %v25 = vand.u32 %v24, 127
    %26 = vset.pattern.permute.xlu0 0
    %27 = vperm.xlu0 %26, %v13
    %v28 = vpop.permute.xlu0 %27
    %vm29 = vcmp.eq.s32.totalorder %v25, %v28
    %v30 = vsel %vm29, %v18, 0.0
    %v31 = vsel %vm14, %v30, 0.0
    %32 = vadd.xlane.f32.xlu0 %v31
    %v33 = vpop.xlane.xlu0 %32
    %v34 = vlog2.pop %v23
    %v35 = vmul.f32 %v34, 0.6931472
    %v36 = vsub.f32 %v35, %v33
    %s37 = smul.u32 0, 8
    %v38 = vlaneseq
    %v39 = vshrl.u32 %v38, 7
    %v40 = vstv %s37
    %v41 = vadd.s32 %v40, %v39
    %vm42 = vcmp.lt.s32.totalorder %v41, 8
    %v43 = vsel %vm42, %v36, 0.0
    %vm44 = vcmask 7168
    %v45 = vsel %vm44, %v43, 0.0
    %46 = vadd.xlane.f32.xlu0 %v45
    %v47 = vpop.xlane.xlu0 %46
    %v48 = vrot.slane %v47, 4
    %v49 = vadd.f32 %v47, %v48
    %v50 = vrot.slane %v49, 2
    %v51 = vadd.f32 %v49, %v50
    %v52 = vrot.slane %v51, 1
    %v53 = vadd.f32 %v51, %v52
    %s54 = vtos %v53
    %vm55 = vcmp.eq.s32.totalorder %v39, 0
    %vm56 = vcmp.eq.s32.totalorder %v25, 0
    %vm57 = vmand %vm55, %vm56
    %v58 = vstv %s54
    %v59 = vsel %vm57, %v58, 0.0
    %60 = vst [vmem:[#allocation2] sm:$0xff] %v59
    // Predicated region
    $region10: #{tpu_custom_call.1} parent=1 // pred_check
      _
    $region11: #{tpu_custom_call.1} parent=1 // pred_check_branch
      %62 = sbr.rel (0) target = $region13
    $region12: #{tpu_custom_call.1} parent=1 // pred_region
      %64 = vsyncadd [#allocation3], 0
      %s66 = sshll.u32 [#allocation2], 4
      %s67 = int_to_ptr.vmem [resolvable:$true] %s66
      %s68 = sshll.u32 %s2, 4
      %s69 = int_to_ptr.hbm [resolvable:$true] %s68
      %71 = dma.vmem_to_hbm [thread:$0]  %s67, 128, %s69, [#allocation3]
    $region13: #{tpu_custom_call.1} parent=1 // pred_fallthru
      _
    // Predicated region
    $region14: #{tpu_custom_call.1} parent=1 // pred_check
      _
    $region15: #{tpu_custom_call.1} parent=1 // pred_check_branch
      %73 = sbr.rel (0) target = $region17
    $region16: #{tpu_custom_call.1} parent=1 // pred_region
      %75 = dma.done [#allocation3], 128
    $region17: #{tpu_custom_call.1} parent=1 // pred_fallthru
      _
    %76 = vsyncpa [#allocation3], 1

</llo_original>
